<compile_context>
chip_gen: v5e
topology: v5e:2x2
jax: 0.10.0
libtpu: 0.0.40
codegen_flags: <defaults>
</compile_context>

<pallas_src>
import jax
import jax.numpy as jnp
from jax.experimental import pallas as pl
from jax.experimental.pallas import tpu as pltpu

_EPS = 1e-5  # PyTorch InstanceNorm3d default eps


def _conv_rows(y, w_t):
    """1x1x1 conv on the VPU.

    y:   (C_in, T)  f32 (channels on sublanes, spatial tile on lanes)
    w_t: (C_out, C_in) f32
    returns (C_out, T) = w_t @ y, built as C_in broadcast multiply-adds.
    """
    acc = w_t[:, 0:1] * y[0:1, :]
    for ci in range(1, y.shape[0]):
        acc = acc + w_t[:, ci:ci + 1] * y[ci:ci + 1, :]
    return acc


def _stats_kernel(g_ref, x_ref, wgt_ref, bg_ref, wxt_ref, bx_ref, stats_ref):
    """Phase 1: accumulate per-(sample, channel) sum / sum-of-squares of g1, x1."""
    t = pl.program_id(1)  # spatial-tile axis (reduction, last in grid)

    @pl.when(t == 0)
    def _init():
        stats_ref[...] = jnp.zeros_like(stats_ref)

    g = g_ref[0].astype(jnp.float32)                       # (F_g, T)
    x = x_ref[0].astype(jnp.float32)                       # (F_l, T)

    g1 = _conv_rows(g, wgt_ref[...]) + bg_ref[...]         # (F_inter, T)
    x1 = _conv_rows(x, wxt_ref[...]) + bx_ref[...]         # (F_inter, T)

    upd = jnp.concatenate(
        [jnp.sum(g1, axis=1, keepdims=True),
         jnp.sum(g1 * g1, axis=1, keepdims=True),
         jnp.sum(x1, axis=1, keepdims=True),
         jnp.sum(x1 * x1, axis=1, keepdims=True)], axis=1)  # (F_inter, 4)
    stats_ref[0] += upd


def _apply_kernel(g_ref, x_ref, wgf_ref, wxf_ref, bf_ref, wpsi_ref, bpsi_ref,
                  o_ref):
    """Phase 2: normalized 1x1 convs + relu + psi + x * psi on one spatial tile."""
    g = g_ref[0].astype(jnp.float32)                       # (F_g, T)
    xf = x_ref[0].astype(jnp.float32)                      # (F_l, T)

    # InstanceNorm folded into the conv weights/bias (per sample), so this is
    # just relu(Wg'·g + Wx'·x + b') on the VPU.
    act = (_conv_rows(g, wgf_ref[0])
           + _conv_rows(xf, wxf_ref[0])
           + bf_ref[0])                                    # (F_inter, T)
    act = jnp.maximum(act, 0.0)

    # psi = sigmoid(w_psi · act + b_psi): weighted sublane reduction -> (1, T)
    psi_logit = jnp.sum(act * wpsi_ref[...], axis=0, keepdims=True) + bpsi_ref[...]
    psi = jax.nn.sigmoid(psi_logit)                        # (1, T), lane-dense

    # gate the ORIGINAL x; broadcast psi across the C sublanes.
    o_ref[0] = (xf * psi).astype(o_ref.dtype)


def _choose_tile(S, F_g, F_l, F_inter, dtype):
    """Largest multiple-of-128 divisor of S that keeps the pipelined working
    set well under the scoped-VMEM default on v5e/v6e/v7x."""
    itemsize = jnp.dtype(dtype).itemsize
    # double-buffered I/O tiles + live f32 intermediates, per spatial element
    per_elem = 2 * (F_g + 2 * F_l) * itemsize + (F_inter + F_g + F_l + 2) * 4
    cap = max(128, (8 * 1024 * 1024) // per_elem)
    if S % 128 != 0:
        # TODO(synk): pad / mask ragged spatial volumes instead of one full-S tile.
        return S
    if S <= cap:
        return S
    best = 128
    t = 128
    while t <= cap:
        if S % t == 0:
            best = t
        t += 128
    return best


def attention_gate(g, x, params):
    """g: (N, F_g, D, H, W), x: (N, F_l, D, H, W) -- NCDHW like PyTorch."""
    wg, bg, wx, bx, wpsi, bpsi = params
    N, F_g = g.shape[0], g.shape[1]
    F_l = x.shape[1]
    F_inter = wg.shape[1]
    spatial = g.shape[2:]
    S = 1
    for d in spatial:
        S *= int(d)

    # NCDHW is already contiguous as (N, C, D*H*W): pure reshape, no transpose.
    g2 = g.reshape(N, F_g, S)
    x2 = x.reshape(N, F_l, S)

    tile = _choose_tile(S, F_g, F_l, F_inter, x.dtype)
    nt = S // tile
    itemsize = jnp.dtype(x.dtype).itemsize

    # Transposed (C_out, C_in) weights, column biases, all f32.
    wgt = jnp.asarray(wg, jnp.float32).T                   # (F_inter, F_g)
    wxt = jnp.asarray(wx, jnp.float32).T                   # (F_inter, F_l)
    bg_f = jnp.asarray(bg, jnp.float32)
    bx_f = jnp.asarray(bx, jnp.float32)
    bg_col = bg_f.reshape(F_inter, 1)
    bx_col = bx_f.reshape(F_inter, 1)
    wpsi_col = jnp.asarray(wpsi, jnp.float32).reshape(F_inter, 1)
    bpsi_2d = jnp.asarray(bpsi, jnp.float32).reshape(1, 1)

    def full2(a):
        return pl.BlockSpec(a.shape, lambda n, t: (0,) * a.ndim)

    # ---------------- phase 1: per-sample channel statistics ----------------
    stats = pl.pallas_call(
        _stats_kernel,
        out_shape=jax.ShapeDtypeStruct((N, F_inter, 4), jnp.float32),
        grid_spec=pltpu.PrefetchScalarGridSpec(
            num_scalar_prefetch=0,
            grid=(N, nt),
            in_specs=[
                pl.BlockSpec((1, F_g, tile), lambda n, t: (n, 0, t)),
                pl.BlockSpec((1, F_l, tile), lambda n, t: (n, 0, t)),
                full2(wgt), full2(bg_col), full2(wxt), full2(bx_col),
            ],
            out_specs=pl.BlockSpec((1, F_inter, 4), lambda n, t: (n, 0, 0)),
        ),
        compiler_params=pltpu.CompilerParams(
            dimension_semantics=("parallel", "arbitrary")),
        cost_estimate=pl.CostEstimate(
            flops=2 * N * S * (F_g + F_l) * F_inter,
            transcendentals=0,
            bytes_accessed=N * S * (F_g + F_l) * itemsize),
    )(g2, x2, wgt, bg_col, wxt, bx_col)

    # Tiny per-sample fold (O(N * F_inter * (F_g + F_l))): turn the sums into
    # InstanceNorm mean / rstd and fold them into the conv weights & bias.
    inv_s = 1.0 / float(S)
    mean_g = stats[:, :, 0] * inv_s
    var_g = jnp.maximum(stats[:, :, 1] * inv_s - mean_g * mean_g, 0.0)
    rstd_g = jax.lax.rsqrt(var_g + _EPS)
    mean_x = stats[:, :, 2] * inv_s
    var_x = jnp.maximum(stats[:, :, 3] * inv_s - mean_x * mean_x, 0.0)
    rstd_x = jax.lax.rsqrt(var_x + _EPS)

    wgf = wgt[None, :, :] * rstd_g[:, :, None]             # (N, F_inter, F_g)
    wxf = wxt[None, :, :] * rstd_x[:, :, None]             # (N, F_inter, F_l)
    bf = ((bg_f[None, :] - mean_g) * rstd_g
          + (bx_f[None, :] - mean_x) * rstd_x)[:, :, None]  # (N, F_inter, 1)

    # ---------------- phase 2: apply norm + relu + psi + gate ---------------
    out = pl.pallas_call(
        _apply_kernel,
        out_shape=jax.ShapeDtypeStruct((N, F_l, S), x.dtype),
        grid_spec=pltpu.PrefetchScalarGridSpec(
            num_scalar_prefetch=0,
            grid=(N, nt),
            in_specs=[
                pl.BlockSpec((1, F_g, tile), lambda n, t: (n, 0, t)),
                pl.BlockSpec((1, F_l, tile), lambda n, t: (n, 0, t)),
                pl.BlockSpec((1, F_inter, F_g), lambda n, t: (n, 0, 0)),
                pl.BlockSpec((1, F_inter, F_l), lambda n, t: (n, 0, 0)),
                pl.BlockSpec((1, F_inter, 1), lambda n, t: (n, 0, 0)),
                full2(wpsi_col), full2(bpsi_2d),
            ],
            out_specs=pl.BlockSpec((1, F_l, tile), lambda n, t: (n, 0, t)),
        ),
        compiler_params=pltpu.CompilerParams(
            dimension_semantics=("parallel", "parallel")),
        cost_estimate=pl.CostEstimate(
            flops=2 * N * S * (F_g + F_l + 1) * F_inter,
            transcendentals=N * S,
            bytes_accessed=N * S * (F_g + 2 * F_l) * itemsize),
    )(g2, x2, wgf, wxf, bf, wpsi_col, bpsi_2d)

    return out.reshape((N, F_l) + spatial)


def _reference(g, x, params):
    """Pure-JAX reference matching the PyTorch forward semantics."""
    wg, bg, wx, bx, wpsi, bpsi = params

    def conv1(y, w, b):  # y: NCDHW, w: (Cin, Cout)
        return jnp.einsum('ncdhw,co->nodhw', y, w) + b[None, :, None, None, None]

    def inorm(y):
        mu = jnp.mean(y, axis=(2, 3, 4), keepdims=True)
        var = jnp.mean((y - mu) ** 2, axis=(2, 3, 4), keepdims=True)
        return (y - mu) / jnp.sqrt(var + _EPS)

    g1 = inorm(conv1(g, wg, bg))
    x1 = inorm(conv1(x, wx, bx))
    act = jnp.maximum(g1 + x1, 0.0)
    psi = jax.nn.sigmoid(conv1(act, wpsi, bpsi))
    return x * psi


if __name__ == "__main__":
    key = jax.random.PRNGKey(0)
    N, F_g, F_l, F_inter = 2, 4, 4, 8
    D = H = W = 8

    ks = jax.random.split(key, 8)
    g = jax.random.normal(ks[0], (N, F_g, D, H, W), dtype=jnp.float32)
    x = jax.random.normal(ks[1], (N, F_l, D, H, W), dtype=jnp.float32)

    # Deterministic synthetic parameters (Conv3d 1x1x1 weights stored as (Cin, Cout))
    wg = jax.random.normal(ks[2], (F_g, F_inter), dtype=jnp.float32) * 0.1
    bg = jax.random.normal(ks[3], (F_inter,), dtype=jnp.float32) * 0.1
    wx = jax.random.normal(ks[4], (F_l, F_inter), dtype=jnp.float32) * 0.1
    bx = jax.random.normal(ks[5], (F_inter,), dtype=jnp.float32) * 0.1
    wpsi = jax.random.normal(ks[6], (F_inter, 1), dtype=jnp.float32) * 0.1
    bpsi = jax.random.normal(ks[7], (1,), dtype=jnp.float32) * 0.1
    params = (wg, bg, wx, bx, wpsi, bpsi)

    out = attention_gate(g, x, params)
    out = jax.block_until_ready(out)

    ref = _reference(g, x, params)
    assert out.shape == (N, F_l, D, H, W)
    assert jnp.allclose(out, ref, atol=1e-4, rtol=1e-4)

    print("KERNEL_OK")
</pallas_src>

<mosaic_0001>
module attributes {stable_mosaic.version = 11 : i64} {
  func.func @_stats_kernel(%arg0: i32, %arg1: i32, %arg2: memref<1x4x512xf32, #tpu.memory_space<vmem>>, %arg3: memref<1x4x512xf32, #tpu.memory_space<vmem>>, %arg4: memref<8x4xf32, #tpu.memory_space<vmem>>, %arg5: memref<8x1xf32, #tpu.memory_space<vmem>>, %arg6: memref<8x4xf32, #tpu.memory_space<vmem>>, %arg7: memref<8x1xf32, #tpu.memory_space<vmem>>, %arg8: memref<1x8x4xf32, #tpu.memory_space<vmem>>) attributes {dimension_semantics = [#tpu.dimension_semantics<parallel>, #tpu.dimension_semantics<arbitrary>], iteration_bounds = array<i64: 2, 1>, scalar_prefetch = 0 : i64, scratch_operands = 0 : i64, tpu.core_type = #tpu.core_type<tc>, window_params = [{transform_indices = @transform_0, window_bounds = array<i64: 1, 4, 512>}, {transform_indices = @transform_1, window_bounds = array<i64: 1, 4, 512>}, {pipeline_mode = #tpu.pipeline_mode<synchronous>, transform_indices = @transform_2, window_bounds = array<i64: 8, 4>}, {pipeline_mode = #tpu.pipeline_mode<synchronous>, transform_indices = @transform_3, window_bounds = array<i64: 8, 1>}, {pipeline_mode = #tpu.pipeline_mode<synchronous>, transform_indices = @transform_4, window_bounds = array<i64: 8, 4>}, {pipeline_mode = #tpu.pipeline_mode<synchronous>, transform_indices = @transform_5, window_bounds = array<i64: 8, 1>}, {transform_indices = @transform_6, window_bounds = array<i64: 1, 8, 4>}]} {
    %c0_i32 = arith.constant 0 : i32
    %0 = arith.cmpi eq, %arg1, %c0_i32 : i32
    %1 = arith.extui %0 : i1 to i32
    %c0_i32_0 = arith.constant 0 : i32
    %2 = arith.cmpi ne, %1, %c0_i32_0 : i32
    scf.if %2 {
      %cst_23 = arith.constant 0.000000e+00 : f32
      %78 = vector.broadcast %cst_23 : f32 to vector<1x8x4xf32>
      %c0_24 = arith.constant 0 : index
      %c0_25 = arith.constant 0 : index
      %c0_26 = arith.constant 0 : index
      %79 = vector.load %arg8[%c0_24, %c0_25, %c0_26] : memref<1x8x4xf32, #tpu.memory_space<vmem>>, vector<1x8x4xf32>
      tpu.vector_store %arg8[%c0_24, %c0_25, %c0_26], %78 {strides = array<i32>} : memref<1x8x4xf32, #tpu.memory_space<vmem>>, vector<1x8x4xf32>,
    } else {
    }
    %c0 = arith.constant 0 : index
    %c0_1 = arith.constant 0 : index
    %c0_2 = arith.constant 0 : index
    %3 = vector.load %arg2[%c0, %c0_1, %c0_2] : memref<1x4x512xf32, #tpu.memory_space<vmem>>, vector<1x4x512xf32>
    %4 = vector.shape_cast %3 : vector<1x4x512xf32> to vector<4x512xf32>
    %c0_3 = arith.constant 0 : index
    %c0_4 = arith.constant 0 : index
    %c0_5 = arith.constant 0 : index
    %5 = vector.load %arg3[%c0_3, %c0_4, %c0_5] : memref<1x4x512xf32, #tpu.memory_space<vmem>>, vector<1x4x512xf32>
    %6 = vector.shape_cast %5 : vector<1x4x512xf32> to vector<4x512xf32>
    %c0_6 = arith.constant 0 : index
    %c0_7 = arith.constant 0 : index
    %7 = vector.load %arg4[%c0_6, %c0_7] : memref<8x4xf32, #tpu.memory_space<vmem>>, vector<8x4xf32>
    %8 = vector.extract_strided_slice %7 {offsets = [0, 0], sizes = [8, 1], strides = [1, 1]} : vector<8x4xf32> to vector<8x1xf32>
    %9 = vector.extract_strided_slice %4 {offsets = [0, 0], sizes = [1, 512], strides = [1, 1]} : vector<4x512xf32> to vector<1x512xf32>
    %10 = vector.broadcast %8 : vector<8x1xf32> to vector<8x512xf32>
    %11 = vector.broadcast %9 : vector<1x512xf32> to vector<8x512xf32>
    %12 = arith.mulf %10, %11 : vector<8x512xf32>
    %13 = vector.extract_strided_slice %7 {offsets = [0, 1], sizes = [8, 1], strides = [1, 1]} : vector<8x4xf32> to vector<8x1xf32>
    %14 = vector.extract_strided_slice %4 {offsets = [1, 0], sizes = [1, 512], strides = [1, 1]} : vector<4x512xf32> to vector<1x512xf32>
    %15 = vector.broadcast %13 : vector<8x1xf32> to vector<8x512xf32>
    %16 = vector.broadcast %14 : vector<1x512xf32> to vector<8x512xf32>
    %17 = arith.mulf %15, %16 : vector<8x512xf32>
    %18 = arith.addf %12, %17 : vector<8x512xf32>
    %19 = vector.extract_strided_slice %7 {offsets = [0, 2], sizes = [8, 1], strides = [1, 1]} : vector<8x4xf32> to vector<8x1xf32>
    %20 = vector.extract_strided_slice %4 {offsets = [2, 0], sizes = [1, 512], strides = [1, 1]} : vector<4x512xf32> to vector<1x512xf32>
    %21 = vector.broadcast %19 : vector<8x1xf32> to vector<8x512xf32>
    %22 = vector.broadcast %20 : vector<1x512xf32> to vector<8x512xf32>
    %23 = arith.mulf %21, %22 : vector<8x512xf32>
    %24 = arith.addf %18, %23 : vector<8x512xf32>
    %25 = vector.extract_strided_slice %7 {offsets = [0, 3], sizes = [8, 1], strides = [1, 1]} : vector<8x4xf32> to vector<8x1xf32>
    %26 = vector.extract_strided_slice %4 {offsets = [3, 0], sizes = [1, 512], strides = [1, 1]} : vector<4x512xf32> to vector<1x512xf32>
    %27 = vector.broadcast %25 : vector<8x1xf32> to vector<8x512xf32>
    %28 = vector.broadcast %26 : vector<1x512xf32> to vector<8x512xf32>
    %29 = arith.mulf %27, %28 : vector<8x512xf32>
    %30 = arith.addf %24, %29 : vector<8x512xf32>
    %c0_8 = arith.constant 0 : index
    %c0_9 = arith.constant 0 : index
    %31 = vector.load %arg5[%c0_8, %c0_9] : memref<8x1xf32, #tpu.memory_space<vmem>>, vector<8x1xf32>
    %32 = vector.broadcast %31 : vector<8x1xf32> to vector<8x512xf32>
    %33 = arith.addf %30, %32 : vector<8x512xf32>
    %c0_10 = arith.constant 0 : index
    %c0_11 = arith.constant 0 : index
    %34 = vector.load %arg6[%c0_10, %c0_11] : memref<8x4xf32, #tpu.memory_space<vmem>>, vector<8x4xf32>
    %35 = vector.extract_strided_slice %34 {offsets = [0, 0], sizes = [8, 1], strides = [1, 1]} : vector<8x4xf32> to vector<8x1xf32>
    %36 = vector.extract_strided_slice %6 {offsets = [0, 0], sizes = [1, 512], strides = [1, 1]} : vector<4x512xf32> to vector<1x512xf32>
    %37 = vector.broadcast %35 : vector<8x1xf32> to vector<8x512xf32>
    %38 = vector.broadcast %36 : vector<1x512xf32> to vector<8x512xf32>
    %39 = arith.mulf %37, %38 : vector<8x512xf32>
    %40 = vector.extract_strided_slice %34 {offsets = [0, 1], sizes = [8, 1], strides = [1, 1]} : vector<8x4xf32> to vector<8x1xf32>
    %41 = vector.extract_strided_slice %6 {offsets = [1, 0], sizes = [1, 512], strides = [1, 1]} : vector<4x512xf32> to vector<1x512xf32>
    %42 = vector.broadcast %40 : vector<8x1xf32> to vector<8x512xf32>
    %43 = vector.broadcast %41 : vector<1x512xf32> to vector<8x512xf32>
    %44 = arith.mulf %42, %43 : vector<8x512xf32>
    %45 = arith.addf %39, %44 : vector<8x512xf32>
    %46 = vector.extract_strided_slice %34 {offsets = [0, 2], sizes = [8, 1], strides = [1, 1]} : vector<8x4xf32> to vector<8x1xf32>
    %47 = vector.extract_strided_slice %6 {offsets = [2, 0], sizes = [1, 512], strides = [1, 1]} : vector<4x512xf32> to vector<1x512xf32>
    %48 = vector.broadcast %46 : vector<8x1xf32> to vector<8x512xf32>
    %49 = vector.broadcast %47 : vector<1x512xf32> to vector<8x512xf32>
    %50 = arith.mulf %48, %49 : vector<8x512xf32>
    %51 = arith.addf %45, %50 : vector<8x512xf32>
    %52 = vector.extract_strided_slice %34 {offsets = [0, 3], sizes = [8, 1], strides = [1, 1]} : vector<8x4xf32> to vector<8x1xf32>
    %53 = vector.extract_strided_slice %6 {offsets = [3, 0], sizes = [1, 512], strides = [1, 1]} : vector<4x512xf32> to vector<1x512xf32>
    %54 = vector.broadcast %52 : vector<8x1xf32> to vector<8x512xf32>
    %55 = vector.broadcast %53 : vector<1x512xf32> to vector<8x512xf32>
    %56 = arith.mulf %54, %55 : vector<8x512xf32>
    %57 = arith.addf %51, %56 : vector<8x512xf32>
    %c0_12 = arith.constant 0 : index
    %c0_13 = arith.constant 0 : index
    %58 = vector.load %arg7[%c0_12, %c0_13] : memref<8x1xf32, #tpu.memory_space<vmem>>, vector<8x1xf32>
    %59 = vector.broadcast %58 : vector<8x1xf32> to vector<8x512xf32>
    %60 = arith.addf %57, %59 : vector<8x512xf32>
    %cst = arith.constant dense<0.000000e+00> : vector<8xf32>
    %61 = vector.multi_reduction <add>, %33, %cst [1] : vector<8x512xf32> to vector<8xf32>
    %62 = vector.shape_cast %61 : vector<8xf32> to vector<8x1xf32>
    %63 = arith.mulf %33, %33 : vector<8x512xf32>
    %cst_14 = arith.constant dense<0.000000e+00> : vector<8xf32>
    %64 = vector.multi_reduction <add>, %63, %cst_14 [1] : vector<8x512xf32> to vector<8xf32>
    %65 = vector.shape_cast %64 : vector<8xf32> to vector<8x1xf32>
    %cst_15 = arith.constant dense<0.000000e+00> : vector<8xf32>
    %66 = vector.multi_reduction <add>, %60, %cst_15 [1] : vector<8x512xf32> to vector<8xf32>
    %67 = vector.shape_cast %66 : vector<8xf32> to vector<8x1xf32>
    %68 = arith.mulf %60, %60 : vector<8x512xf32>
    %cst_16 = arith.constant dense<0.000000e+00> : vector<8xf32>
    %69 = vector.multi_reduction <add>, %68, %cst_16 [1] : vector<8x512xf32> to vector<8xf32>
    %70 = vector.shape_cast %69 : vector<8xf32> to vector<8x1xf32>
    %71 = tpu.concatenate %62, %65, %67, %70 in 1 : vector<8x1xf32>, vector<8x1xf32>, vector<8x1xf32>, vector<8x1xf32> -> vector<8x4xf32>
    %c0_17 = arith.constant 0 : index
    %c0_18 = arith.constant 0 : index
    %c0_19 = arith.constant 0 : index
    %72 = vector.load %arg8[%c0_17, %c0_18, %c0_19] : memref<1x8x4xf32, #tpu.memory_space<vmem>>, vector<1x8x4xf32>
    %73 = vector.shape_cast %72 : vector<1x8x4xf32> to vector<8x4xf32>
    %74 = arith.addf %73, %71 : vector<8x4xf32>
    %c0_20 = arith.constant 0 : index
    %c0_21 = arith.constant 0 : index
    %c0_22 = arith.constant 0 : index
    %75 = vector.load %arg8[%c0_20, %c0_21, %c0_22] : memref<1x8x4xf32, #tpu.memory_space<vmem>>, vector<1x8x4xf32>
    %76 = vector.shape_cast %75 : vector<1x8x4xf32> to vector<8x4xf32>
    %77 = vector.shape_cast %74 : vector<8x4xf32> to vector<1x8x4xf32>
    tpu.vector_store %arg8[%c0_20, %c0_21, %c0_22], %77 {strides = array<i32>} : memref<1x8x4xf32, #tpu.memory_space<vmem>>, vector<1x8x4xf32>,
    return
  }
  func.func @transform_0(%arg0: i32, %arg1: i32) -> (i32, i32, i32) {
    %c0_i32 = arith.constant 0 : i32
    %c0_i32_0 = arith.constant 0 : i32
    return %arg0, %c0_i32, %arg1 : i32, i32, i32
  }
  func.func @transform_1(%arg0: i32, %arg1: i32) -> (i32, i32, i32) {
    %c0_i32 = arith.constant 0 : i32
    %c0_i32_0 = arith.constant 0 : i32
    return %arg0, %c0_i32, %arg1 : i32, i32, i32
  }
  func.func @transform_2(%arg0: i32, %arg1: i32) -> (i32, i32) {
    %c0_i32 = arith.constant 0 : i32
    %c0_i32_0 = arith.constant 0 : i32
    %c0_i32_1 = arith.constant 0 : i32
    return %c0_i32, %c0_i32_0 : i32, i32
  }
  func.func @transform_3(%arg0: i32, %arg1: i32) -> (i32, i32) {
    %c0_i32 = arith.constant 0 : i32
    %c0_i32_0 = arith.constant 0 : i32
    %c0_i32_1 = arith.constant 0 : i32
    return %c0_i32, %c0_i32_0 : i32, i32
  }
  func.func @transform_4(%arg0: i32, %arg1: i32) -> (i32, i32) {
    %c0_i32 = arith.constant 0 : i32
    %c0_i32_0 = arith.constant 0 : i32
    %c0_i32_1 = arith.constant 0 : i32
    return %c0_i32, %c0_i32_0 : i32, i32
  }
  func.func @transform_5(%arg0: i32, %arg1: i32) -> (i32, i32) {
    %c0_i32 = arith.constant 0 : i32
    %c0_i32_0 = arith.constant 0 : i32
    %c0_i32_1 = arith.constant 0 : i32
    return %c0_i32, %c0_i32_0 : i32, i32
  }
  func.func @transform_6(%arg0: i32, %arg1: i32) -> (i32, i32, i32) {
    %c0_i32 = arith.constant 0 : i32
    %c0_i32_0 = arith.constant 0 : i32
    %c0_i32_1 = arith.constant 0 : i32
    return %arg0, %c0_i32, %c0_i32_0 : i32, i32, i32
  }
}

</mosaic_0001>

<llo_original>
// kernel: tpu_custom_call.1
$region0: #{tpu_custom_call.1}
  #allocation0 [shape = 'u32[]', space=smem, size = 0x4, offset = 0x4, fixed_abs, tag = 'smem constant byte address 0x4 - core index']
  #allocation1 [shape = 'u32[72,128]{1,0:T(1,128)}', space=vmem, size = 0x9000, scoped, tag = 'internal scratch']
  %s0 = inlined_call_operand.vmem [shape: f32[2,4,512], index: 0, kind: input, shape index: {}]
  %s1 = inlined_call_operand.hbm [shape: f32[2,4,512], index: 1, kind: input, shape index: {}]
  %s2 = inlined_call_operand.vmem [shape: f32[8,4], index: 2, kind: input, shape index: {}]
  %s3 = inlined_call_operand.vmem [shape: f32[8,1], index: 3, kind: input, shape index: {}]
  %s4 = inlined_call_operand.vmem [shape: f32[8,4], index: 4, kind: input, shape index: {}]
  %s5 = inlined_call_operand.vmem [shape: f32[8,1], index: 5, kind: input, shape index: {}]
  %s6 = inlined_call_operand.vmem [shape: f32[2,8,4], index: 6, kind: output, shape index: {}]
  %s7 = sld [smem:[#allocation0]]
  $region65: #{tpu_custom_call.1} parent=0
    _
  %s9 = ssub.s32 1, %s7
  %s10 = scalar_select 0, %s9, %s7
  $region1: #{tpu_custom_call.1} parent=0
    #allocation2 [shape = 'u8[16384]{0}', space=vmem, size = 0x4000, scoped, tag = 'input window, operand 1']
    #allocation3 [shape = 's32[2]{0}', space=sflag, size = 0x8, scoped, tag = 'scoped memory for tpu_custom_call.1']
    %11 = vsyncpa [#allocation3], 0
    %s12 = scalar_lea.sflag [#allocation3], 1
    %13 = vsyncpa %s12, 0
    loop: start=0, step=1, limit=4
    $region2: #{tpu_custom_call.1} parent=1 // loop_pre_header
      _
    $region3: #{tpu_custom_call.1} parent=1 // loop_header
      %s15 = sphi 0, %s19
      %p16 = scmp.ge.s32.totalorder %s15, 4
      %s22 = sphi 0, %s34
      %s23 = sphi 0, %s30
      %s24 = sphi 0, %s22
      %s25 = sphi 0, %s23
      %s26 = sphi 0, %s24
      %s27 = sphi 0, %s25
      %s39 = sphi 0, %s41
      %s42 = sphi 0, %s39
      %s43 = sphi 0, %s42
      %s59 = sphi 0, %s43
      %s67 = sphi 0, %s69
      %s70 = sphi 0, %s67
      %s71 = sphi 0, %s70
      %s87 = sphi 0, %s71
      %s91 = sphi 0, %s91
      %s93 = sphi 0, %s91
      %s94 = sphi 0, %s93
      %s108 = sphi 0, %s94
      %s112 = sphi 0, %s112
      %s114 = sphi 0, %s112
      %s115 = sphi 0, %s114
      %s129 = sphi 0, %s115
      %s133 = sphi 0, %s133
      %s135 = sphi 0, %s133
      %s136 = sphi 0, %s135
      %s150 = sphi 0, %s136
      %s154 = sphi 0, %s154
      %s156 = sphi 0, %s154
      %s157 = sphi 0, %s156
      %s171 = sphi 0, %s157
      %s177 = sphi 0, %s179
      %s180 = sphi 0, %s177
      %s181 = sphi 0, %s180
      %s197 = sphi 0, %s181
    $region4: #{tpu_custom_call.1} parent=1 // loop_header_branch
      %18 = sbr.rel (%p16) target = $region8
    $region5: #{tpu_custom_call.1} parent=1 // loop_body
      %s20 = ssub.s32 %s15, 1
      %s21 = ssub.s32 %s15, 2
      %s28 = sadd.s32 1, %s23
      %p29 = scmp.ge.s32.totalorder %s28, 1
      %s30 = scalar_select %p29, 0, %s28
      %s31 = sadd.s32 1, %s22
      %s32 = scalar_select %p29, %s31, %s22
      %p33 = scmp.ge.s32.totalorder %s32, 2
      %s34 = scalar_select %p33, 0, %s32
      %s35 = ssub.s32 %s22, %s34
      %s36 = ssub.s32 %s23, %s30
      %s37 = sor.u32 %s35, %s36
      %p38 = scmp.eq.s32.totalorder %s37, 0
      %s40 = sadd.s32 %s39, 1
      %s41 = scalar_select %p38, %s39, %s40
      %p44 = pneg %p38
      %p45 = scmp.eq.s32.totalorder %s15, 1
      %p46 = por %p44, %p45
      %p47 = scmp.ne.s32.totalorder %s39, %s42
      %p48 = scmp.eq.s32.totalorder %s15, 0
      %p49 = por %p47, %p48
      %p50 = scmp.ne.s32.totalorder %s39, %s42
      %p51 = scmp.eq.s32.totalorder %s20, 1
      %p52 = por %p50, %p51
      %p53 = scmp.ne.s32.totalorder %s42, %s43
      %p54 = scmp.eq.s32.totalorder %s20, 0
      %p55 = por %p53, %p54
      %p56 = scmp.ne.s32.totalorder %s42, %s43
      %p57 = scmp.eq.s32.totalorder %s21, 1
      %p58 = por %p56, %p57
      %p60 = scmp.ne.s32.totalorder %s43, %s59
      %p61 = scmp.eq.s32.totalorder %s21, 0
      %p62 = por %p60, %p61
      %s63 = ssub.s32 %s22, %s34
      %s64 = ssub.s32 %s23, %s30
      %s65 = sor.u32 %s63, %s64
      %p66 = scmp.eq.s32.totalorder %s65, 0
      %s68 = sadd.s32 %s67, 1
      %s69 = scalar_select %p66, %s67, %s68
      %p72 = pneg %p66
      %p73 = scmp.eq.s32.totalorder %s15, 1
      %p74 = por %p72, %p73
      %p75 = scmp.ne.s32.totalorder %s67, %s70
      %p76 = scmp.eq.s32.totalorder %s15, 0
      %p77 = por %p75, %p76
      %p78 = scmp.ne.s32.totalorder %s67, %s70
      %p79 = scmp.eq.s32.totalorder %s20, 1
      %p80 = por %p78, %p79
      %p81 = scmp.ne.s32.totalorder %s70, %s71
      %p82 = scmp.eq.s32.totalorder %s20, 0
      %p83 = por %p81, %p82
      %p84 = scmp.ne.s32.totalorder %s70, %s71
      %p85 = scmp.eq.s32.totalorder %s21, 1
      %p86 = por %p84, %p85
      %p88 = scmp.ne.s32.totalorder %s71, %s87
      %p89 = scmp.eq.s32.totalorder %s21, 0
      %p90 = por %p88, %p89
      %s92 = sadd.s32 %s91, 1
      %p95 = scmp.eq.s32.totalorder %s15, 1
      %p96 = scmp.ne.s32.totalorder %s91, %s93
      %p97 = scmp.eq.s32.totalorder %s15, 0
      %p98 = por %p96, %p97
      %p99 = scmp.ne.s32.totalorder %s91, %s93
      %p100 = scmp.eq.s32.totalorder %s20, 1
      %p101 = por %p99, %p100
      %p102 = scmp.ne.s32.totalorder %s93, %s94
      %p103 = scmp.eq.s32.totalorder %s20, 0
      %p104 = por %p102, %p103
      %p105 = scmp.ne.s32.totalorder %s93, %s94
      %p106 = scmp.eq.s32.totalorder %s21, 1
      %p107 = por %p105, %p106
      %p109 = scmp.ne.s32.totalorder %s94, %s108
      %p110 = scmp.eq.s32.totalorder %s21, 0
      %p111 = por %p109, %p110
      %s113 = sadd.s32 %s112, 1
      %p116 = scmp.eq.s32.totalorder %s15, 1
      %p117 = scmp.ne.s32.totalorder %s112, %s114
      %p118 = scmp.eq.s32.totalorder %s15, 0
      %p119 = por %p117, %p118
      %p120 = scmp.ne.s32.totalorder %s112, %s114
      %p121 = scmp.eq.s32.totalorder %s20, 1
      %p122 = por %p120, %p121
      %p123 = scmp.ne.s32.totalorder %s114, %s115
      %p124 = scmp.eq.s32.totalorder %s20, 0
      %p125 = por %p123, %p124
      %p126 = scmp.ne.s32.totalorder %s114, %s115
      %p127 = scmp.eq.s32.totalorder %s21, 1
      %p128 = por %p126, %p127
      %p130 = scmp.ne.s32.totalorder %s115, %s129
      %p131 = scmp.eq.s32.totalorder %s21, 0
      %p132 = por %p130, %p131
      %s134 = sadd.s32 %s133, 1
      %p137 = scmp.eq.s32.totalorder %s15, 1
      %p138 = scmp.ne.s32.totalorder %s133, %s135
      %p139 = scmp.eq.s32.totalorder %s15, 0
      %p140 = por %p138, %p139
      %p141 = scmp.ne.s32.totalorder %s133, %s135
      %p142 = scmp.eq.s32.totalorder %s20, 1
      %p143 = por %p141, %p142
      %p144 = scmp.ne.s32.totalorder %s135, %s136
      %p145 = scmp.eq.s32.totalorder %s20, 0
      %p146 = por %p144, %p145
      %p147 = scmp.ne.s32.totalorder %s135, %s136
      %p148 = scmp.eq.s32.totalorder %s21, 1
      %p149 = por %p147, %p148
      %p151 = scmp.ne.s32.totalorder %s136, %s150
      %p152 = scmp.eq.s32.totalorder %s21, 0
      %p153 = por %p151, %p152
      %s155 = sadd.s32 %s154, 1
      %p158 = scmp.eq.s32.totalorder %s15, 1
      %p159 = scmp.ne.s32.totalorder %s154, %s156
      %p160 = scmp.eq.s32.totalorder %s15, 0
      %p161 = por %p159, %p160
      %p162 = scmp.ne.s32.totalorder %s154, %s156
      %p163 = scmp.eq.s32.totalorder %s20, 1
      %p164 = por %p162, %p163
      %p165 = scmp.ne.s32.totalorder %s156, %s157
      %p166 = scmp.eq.s32.totalorder %s20, 0
      %p167 = por %p165, %p166
      %p168 = scmp.ne.s32.totalorder %s156, %s157
      %p169 = scmp.eq.s32.totalorder %s21, 1
      %p170 = por %p168, %p169
      %p172 = scmp.ne.s32.totalorder %s157, %s171
      %p173 = scmp.eq.s32.totalorder %s21, 0
      %p174 = por %p172, %p173
      %s175 = ssub.s32 %s22, %s34
      %p176 = scmp.eq.s32.totalorder %s175, 0
      %s178 = sadd.s32 %s177, 1
      %s179 = scalar_select %p176, %s177, %s178
      %p182 = pneg %p176
      %p183 = scmp.eq.s32.totalorder %s15, 1
      %p184 = por %p182, %p183
      %p185 = scmp.ne.s32.totalorder %s177, %s180
      %p186 = scmp.eq.s32.totalorder %s15, 0
      %p187 = por %p185, %p186
      %p188 = scmp.ne.s32.totalorder %s177, %s180
      %p189 = scmp.eq.s32.totalorder %s20, 1
      %p190 = por %p188, %p189
      %p191 = scmp.ne.s32.totalorder %s180, %s181
      %p192 = scmp.eq.s32.totalorder %s20, 0
      %p193 = por %p191, %p192
      %p194 = scmp.ne.s32.totalorder %s180, %s181
      %p195 = scmp.eq.s32.totalorder %s21, 1
      %p196 = por %p194, %p195
      %p198 = scmp.ne.s32.totalorder %s181, %s197
      %p199 = scmp.eq.s32.totalorder %s21, 0
      %p200 = por %p198, %p199
      %p201 = scmp.le.s32.totalorder 1, %s15
      %p202 = scmp.lt.s32.totalorder %s15, 3
      %p203 = pnand %p201, %p202
      %p204 = pneg %p203
      // Predicated region
      $region9: #{tpu_custom_call.1} parent=5 // pred_check
        _
      $region10: #{tpu_custom_call.1} parent=5 // pred_check_branch
        %206 = sbr.rel (%p203) target = $region12
      $region11: #{tpu_custom_call.1} parent=5 // pred_region
        %s207 = ssub.s32 %s15, 1
        // Predicated region
        $region13: #{tpu_custom_call.1} parent=11 // pred_check
          %p208 = pneg %p104
        $region14: #{tpu_custom_call.1} parent=11 // pred_check_branch
          %210 = sbr.rel (%p208) target = $region16
        $region15: #{tpu_custom_call.1} parent=11 // pred_region
          _
        $region16: #{tpu_custom_call.1} parent=11 // pred_fallthru
          _
        // Predicated region
        $region17: #{tpu_custom_call.1} parent=11 // pred_check
          %p211 = pneg %p125
        $region18: #{tpu_custom_call.1} parent=11 // pred_check_branch
          %213 = sbr.rel (%p211) target = $region20
        $region19: #{tpu_custom_call.1} parent=11 // pred_region
          _
        $region20: #{tpu_custom_call.1} parent=11 // pred_fallthru
          _
        // Predicated region
        $region21: #{tpu_custom_call.1} parent=11 // pred_check
          %p214 = pneg %p146
        $region22: #{tpu_custom_call.1} parent=11 // pred_check_branch
          %216 = sbr.rel (%p214) target = $region24
        $region23: #{tpu_custom_call.1} parent=11 // pred_region
          _
        $region24: #{tpu_custom_call.1} parent=11 // pred_fallthru
          _
        // Predicated region
        $region25: #{tpu_custom_call.1} parent=11 // pred_check
          %p217 = pneg %p167
        $region26: #{tpu_custom_call.1} parent=11 // pred_check_branch
          %219 = sbr.rel (%p217) target = $region28
        $region27: #{tpu_custom_call.1} parent=11 // pred_region
          _
        $region28: #{tpu_custom_call.1} parent=11 // pred_fallthru
          _
      $region12: #{tpu_custom_call.1} parent=5 // pred_fallthru
        _
      %p220 = scmp.lt.s32.totalorder %s15, 2
      // Predicated region
      $region29: #{tpu_custom_call.1} parent=5 // pred_check
        %p221 = pneg %p220
      $region30: #{tpu_custom_call.1} parent=5 // pred_check_branch
        %223 = sbr.rel (%p221) target = $region32
      $region31: #{tpu_custom_call.1} parent=5 // pred_region
        // Predicated region
        $region33: #{tpu_custom_call.1} parent=31 // pred_check
          %p224 = pneg %p49
        $region34: #{tpu_custom_call.1} parent=31 // pred_check_branch
          %226 = sbr.rel (%p224) target = $region36
        $region35: #{tpu_custom_call.1} parent=31 // pred_region
          %s227 = smul.u32 4, %s23
          %p228 = scmp.lt.s32.totalorder %s22, 1
          %s229 = scalar_select %p228, %s22, 1
          %p230 = scmp.lt.s32.totalorder %s227, 3
          %s231 = scalar_select %p230, %s227, 3
          %s232 = smul.addr %s229, 4
          %s233 = sadd.s32 %s231, %s232
          %s234 = smul.addr %s233, 4
          %s235 = scalar_lea.vmem %s0, %s234
          %s236 = smul.u32 4, %s23
        $region36: #{tpu_custom_call.1} parent=31 // pred_fallthru
          _
        // Predicated region
        $region37: #{tpu_custom_call.1} parent=31 // pred_check
          %p237 = pneg %p77
        $region38: #{tpu_custom_call.1} parent=31 // pred_check_branch
          %239 = sbr.rel (%p237) target = $region40
        $region39: #{tpu_custom_call.1} parent=31 // pred_region
          %s240 = sand.u32 %s67, 1
          %s241 = scalar_lea.sflag [#allocation3], %s240
          %s242 = sand.u32 %s67, 1
          %s243 = smul.addr %s242, 16
          %s244 = scalar_lea.vmem [#allocation2], %s243
          %s245 = smul.u32 4, %s23
          %247 = vsyncadd %s241, 0
          %s248 = smul.addr %s22, 4
          %s249 = sadd.s32 %s245, %s248
          %s250 = smul.addr %s249, 4
          %s251 = scalar_lea.hbm %s1, %s250
          %s253 = sshll.u32 %s251, 4
          %s254 = int_to_ptr.hbm [resolvable:$true] %s253
          %s255 = sshll.u32 %s244, 4
          %s256 = int_to_ptr.vmem [resolvable:$true] %s255
          %258 = dma.hbm_to_vmem [thread:$0]  %s254, 256, %s256, %s241
        $region40: #{tpu_custom_call.1} parent=31 // pred_fallthru
          _
      $region32: #{tpu_custom_call.1} parent=5 // pred_fallthru
        _
      %p259 = scmp.le.s32.totalorder 1, %s15
      %p260 = scmp.lt.s32.totalorder %s15, 3
      %p261 = pnand %p259, %p260
      %p262 = pneg %p261
      // Predicated region
      $region41: #{tpu_custom_call.1} parent=5 // pred_check
        _
      $region42: #{tpu_custom_call.1} parent=5 // pred_check_branch
        %264 = sbr.rel (%p261) target = $region44
      $region43: #{tpu_custom_call.1} parent=5 // pred_region
        %s265 = ssub.s32 %s15, 1
        %s266 = sand.u32 %s70, 1
        %s267 = scalar_lea.sflag [#allocation3], %s266
        %s268 = sand.u32 %s70, 1
        %s269 = smul.addr %s268, 16
        %s270 = scalar_lea.vmem [#allocation2], %s269
        // Predicated region
        $region45: #{tpu_custom_call.1} parent=43 // pred_check
          %p271 = pneg %p83
        $region46: #{tpu_custom_call.1} parent=43 // pred_check_branch
          %273 = sbr.rel (%p271) target = $region48
        $region47: #{tpu_custom_call.1} parent=43 // pred_region
          %275 = dma.done %s267, 256
        $region48: #{tpu_custom_call.1} parent=43 // pred_fallthru
          _
        %s276 = smul.u32 4, %s25
        %p277 = scmp.lt.s32.totalorder %s24, 1
        %s278 = scalar_select %p277, %s24, 1
        %p279 = scmp.lt.s32.totalorder %s276, 3
        %s280 = scalar_select %p279, %s276, 3
        %s281 = smul.addr %s278, 4
        %s282 = sadd.s32 %s280, %s281
        %s283 = smul.addr %s282, 4
        %s284 = scalar_lea.vmem %s0, %s283
        %p285 = pneg %p55
        %p286 = pneg %p52
        %s287 = sand.u32 %s70, 1
        %s288 = scalar_lea.sflag [#allocation3], %s287
        %s289 = sand.u32 %s70, 1
        %s290 = smul.addr %s289, 16
        %s291 = scalar_lea.vmem [#allocation2], %s290
        %p292 = pneg %p83
        %p293 = pneg %p80
        %p294 = pneg %p104
        %p295 = pneg %p101
        %p296 = pneg %p125
        %p297 = pneg %p122
        %p298 = pneg %p146
        %p299 = pneg %p143
        %p300 = pneg %p167
        %p301 = pneg %p164
        %p302 = pneg %p193
        %p303 = pneg %p190
        %p304 = scmp.lt.s32.totalorder %s24, 1
        %s305 = scalar_select %p304, %s24, 1
        %s306 = smul.addr %s305, 8
        %s307 = scalar_lea.vmem %s6, %s306
        %s308 = smul.u32 4, %s25
        %p309 = scmp.lt.s32.totalorder %s24, 1
        %s310 = scalar_select %p309, %s24, 1
        %p311 = scmp.lt.s32.totalorder %s308, 3
        %s312 = scalar_select %p311, %s308, 3
        %s313 = smul.addr %s310, 4
        %s314 = sadd.s32 %s312, %s313
        %s315 = smul.addr %s314, 4
        %s316 = scalar_lea.vmem %s0, %s315
        %s317 = smul.u32 4, %s25
        %s318 = smul.u32 4, %s25
        %p319 = scmp.lt.s32.totalorder %s24, 1
        %s320 = scalar_select %p319, %s24, 1
        %s321 = smul.addr %s320, 8
        %s322 = scalar_lea.vmem %s6, %s321
        %p323 = scmp.eq.s32.totalorder %s25, 0
        // Predicated region
        $region49: #{tpu_custom_call.1} parent=43 // pred_check
          %p324 = pneg %p323
        $region50: #{tpu_custom_call.1} parent=43 // pred_check_branch
          %326 = sbr.rel (%p324) target = $region52
        $region51: #{tpu_custom_call.1} parent=43 // pred_region
          %vm327 = vcmask 31744
          %328 = vst.msk [vmem:[%s322] sm:$0xff] %vm327, 0.0
        $region52: #{tpu_custom_call.1} parent=43 // pred_fallthru
          _
        %v329 = vld [vmem:[%s316] sm:$0xff]
        %v330 = vld [vmem:[%s316 + $0x8] sm:$0xff]
        %v331 = vld [vmem:[%s270] sm:$0xff]
        %v332 = vld [vmem:[%s270 + $0x8] sm:$0xff]
        %v333 = vld [vmem:[%s2] sm:$0xff]
        %335 = vset.pattern.permute.xlu0 0
        %336 = vperm.xlu0 %335, %v333
        %v337 = vpop.permute.xlu0 %336
        %v341 = vperm.slane %v329, 0
        %v342 = vperm.slane %v329, 4
        %v343 = vperm.slane %v330, 0
        %v344 = vperm.slane %v330, 4
        %v349 = vperm.slane %v341, 0
        %v350 = vperm.slane %v342, 0
        %v351 = vperm.slane %v343, 0
        %v352 = vperm.slane %v344, 0
        %v353 = vmul.f32 %v337, %v349
        %v354 = vmul.f32 %v337, %v350
        %v355 = vmul.f32 %v337, %v351
        %v356 = vmul.f32 %v337, %v352
        %357 = vset.pattern.permute.xlu0 1
        %358 = vperm.xlu0 %357, %v333
        %v359 = vpop.permute.xlu0 %358
        %v361 = vperm.slane %v329, 1
        %v362 = vperm.slane %v329, 5
        %v363 = vperm.slane %v330, 1
        %v364 = vperm.slane %v330, 5
        %v369 = vperm.slane %v361, 1
        %v370 = vperm.slane %v362, 1
        %v371 = vperm.slane %v363, 1
        %v372 = vperm.slane %v364, 1
        %v373 = vmul.f32 %v359, %v369
        %v374 = vmul.f32 %v359, %v370
        %v375 = vmul.f32 %v359, %v371
        %v376 = vmul.f32 %v359, %v372
        %v377 = vadd.f32 %v353, %v373
        %v378 = vadd.f32 %v354, %v374
        %v379 = vadd.f32 %v355, %v375
        %v380 = vadd.f32 %v356, %v376
        %381 = vset.pattern.permute.xlu0 2
        %382 = vperm.xlu0 %381, %v333
        %v383 = vpop.permute.xlu0 %382
        %v385 = vperm.slane %v329, 2
        %v386 = vperm.slane %v329, 6
        %v387 = vperm.slane %v330, 2
        %v388 = vperm.slane %v330, 6
        %v393 = vperm.slane %v385, 2
        %v394 = vperm.slane %v386, 2
        %v395 = vperm.slane %v387, 2
        %v396 = vperm.slane %v388, 2
        %v397 = vmul.f32 %v383, %v393
        %v398 = vmul.f32 %v383, %v394
        %v399 = vmul.f32 %v383, %v395
        %v400 = vmul.f32 %v383, %v396
        %v401 = vadd.f32 %v377, %v397
        %v402 = vadd.f32 %v378, %v398
        %v403 = vadd.f32 %v379, %v399
        %v404 = vadd.f32 %v380, %v400
        %405 = vset.pattern.permute.xlu0 3
        %406 = vperm.xlu0 %405, %v333
        %v407 = vpop.permute.xlu0 %406
        %v409 = vperm.slane %v329, 3
        %v410 = vperm.slane %v329, 7
        %v411 = vperm.slane %v330, 3
        %v412 = vperm.slane %v330, 7
        %v417 = vperm.slane %v409, 3
        %v418 = vperm.slane %v410, 3
        %v419 = vperm.slane %v411, 3
        %v420 = vperm.slane %v412, 3
        %v421 = vmul.f32 %v407, %v417
        %v422 = vmul.f32 %v407, %v418
        %v423 = vmul.f32 %v407, %v419
        %v424 = vmul.f32 %v407, %v420
        %v425 = vadd.f32 %v401, %v421
        %v426 = vadd.f32 %v402, %v422
        %v427 = vadd.f32 %v403, %v423
        %v428 = vadd.f32 %v404, %v424
        %v429 = vld [vmem:[%s3] sm:$0xff]
        %431 = vset.pattern.permute.xlu0 0
        %432 = vperm.xlu0 %431, %v429
        %v433 = vpop.permute.xlu0 %432
        %v435 = vadd.f32 %v425, %v433
        %v436 = vadd.f32 %v426, %v433
        %v437 = vadd.f32 %v427, %v433
        %v438 = vadd.f32 %v428, %v433
        %v439 = vld [vmem:[%s4] sm:$0xff]
        %441 = vset.pattern.permute.xlu0 0
        %442 = vperm.xlu0 %441, %v439
        %v443 = vpop.permute.xlu0 %442
        %v447 = vperm.slane %v331, 0
        %v448 = vperm.slane %v331, 4
        %v449 = vperm.slane %v332, 0
        %v450 = vperm.slane %v332, 4
        %v455 = vperm.slane %v447, 0
        %v456 = vperm.slane %v448, 0
        %v457 = vperm.slane %v449, 0
        %v458 = vperm.slane %v450, 0
        %v459 = vmul.f32 %v443, %v455
        %v460 = vmul.f32 %v443, %v456
        %v461 = vmul.f32 %v443, %v457
        %v462 = vmul.f32 %v443, %v458
        %463 = vset.pattern.permute.xlu0 1
        %464 = vperm.xlu0 %463, %v439
        %v465 = vpop.permute.xlu0 %464
        %v467 = vperm.slane %v331, 1
        %v468 = vperm.slane %v331, 5
        %v469 = vperm.slane %v332, 1
        %v470 = vperm.slane %v332, 5
        %v475 = vperm.slane %v467, 1
        %v476 = vperm.slane %v468, 1
        %v477 = vperm.slane %v469, 1
        %v478 = vperm.slane %v470, 1
        %v479 = vmul.f32 %v465, %v475
        %v480 = vmul.f32 %v465, %v476
        %v481 = vmul.f32 %v465, %v477
        %v482 = vmul.f32 %v465, %v478
        %v483 = vadd.f32 %v459, %v479
        %v484 = vadd.f32 %v460, %v480
        %v485 = vadd.f32 %v461, %v481
        %v486 = vadd.f32 %v462, %v482
        %487 = vset.pattern.permute.xlu0 2
        %488 = vperm.xlu0 %487, %v439
        %v489 = vpop.permute.xlu0 %488
        %v491 = vperm.slane %v331, 2
        %v492 = vperm.slane %v331, 6
        %v493 = vperm.slane %v332, 2
        %v494 = vperm.slane %v332, 6
        %v499 = vperm.slane %v491, 2
        %v500 = vperm.slane %v492, 2
        %v501 = vperm.slane %v493, 2
        %v502 = vperm.slane %v494, 2
        %v503 = vmul.f32 %v489, %v499
        %v504 = vmul.f32 %v489, %v500
        %v505 = vmul.f32 %v489, %v501
        %v506 = vmul.f32 %v489, %v502
        %v507 = vadd.f32 %v483, %v503
        %v508 = vadd.f32 %v484, %v504
        %v509 = vadd.f32 %v485, %v505
        %v510 = vadd.f32 %v486, %v506
        %511 = vset.pattern.permute.xlu0 3
        %512 = vperm.xlu0 %511, %v439
        %v513 = vpop.permute.xlu0 %512
        %v515 = vperm.slane %v331, 3
        %v516 = vperm.slane %v331, 7
        %v517 = vperm.slane %v332, 3
        %v518 = vperm.slane %v332, 7
        %v523 = vperm.slane %v515, 3
        %v524 = vperm.slane %v516, 3
        %v525 = vperm.slane %v517, 3
        %v526 = vperm.slane %v518, 3
        %v527 = vmul.f32 %v513, %v523
        %v528 = vmul.f32 %v513, %v524
        %v529 = vmul.f32 %v513, %v525
        %v530 = vmul.f32 %v513, %v526
        %v531 = vadd.f32 %v507, %v527
        %v532 = vadd.f32 %v508, %v528
        %v533 = vadd.f32 %v509, %v529
        %v534 = vadd.f32 %v510, %v530
        %v535 = vld [vmem:[%s5] sm:$0xff]
        %537 = vset.pattern.permute.xlu0 0
        %538 = vperm.xlu0 %537, %v535
        %v539 = vpop.permute.xlu0 %538
        %v541 = vadd.f32 %v531, %v539
        %v542 = vadd.f32 %v532, %v539
        %v543 = vadd.f32 %v533, %v539
        %v544 = vadd.f32 %v534, %v539
        %v545 = vadd.f32 %v435, %v436
        %v546 = vadd.f32 %v545, %v437
        %v547 = vadd.f32 %v546, %v438
        %548 = vadd.xlane.f32.xlu0 %v547
        %v549 = vpop.xlane.xlu0 %548
        %v550 = vmul.f32 %v435, %v435
        %v551 = vmul.f32 %v436, %v436
        %v552 = vmul.f32 %v437, %v437
        %v553 = vmul.f32 %v438, %v438
        %v554 = vadd.f32 %v550, %v551
        %v555 = vadd.f32 %v554, %v552
        %v556 = vadd.f32 %v555, %v553
        %557 = vadd.xlane.f32.xlu0 %v556
        %v558 = vpop.xlane.xlu0 %557
        %v559 = vadd.f32 %v541, %v542
        %v560 = vadd.f32 %v559, %v543
        %v561 = vadd.f32 %v560, %v544
        %562 = vadd.xlane.f32.xlu0 %v561
        %v563 = vpop.xlane.xlu0 %562
        %v564 = vmul.f32 %v541, %v541
        %v565 = vmul.f32 %v542, %v542
        %v566 = vmul.f32 %v543, %v543
        %v567 = vmul.f32 %v544, %v544
        %v568 = vadd.f32 %v564, %v565
        %v569 = vadd.f32 %v568, %v566
        %v570 = vadd.f32 %v569, %v567
        %571 = vadd.xlane.f32.xlu0 %v570
        %v572 = vpop.xlane.xlu0 %571
        %vm573 = vcmask 7168
        %v574 = vsel %vm573, %v549, %v558
        %vm575 = vcmask 15360
        %v576 = vsel %vm575, %v574, %v563
        %vm577 = vcmask 23552
        %v578 = vsel %vm577, %v576, %v572
        %v579 = vld [vmem:[%s322] sm:$0xff]
        %v580 = vadd.f32 %v579, %v578
        %vm581 = vcmask 31744
        %582 = vst.msk [vmem:[%s322] sm:$0xff] %vm581, %v580
        %p583 = scmp.lt.s32.totalorder %s24, 1
        %s584 = scalar_select %p583, %s24, 1
        %s585 = smul.addr %s584, 8
        %s586 = scalar_lea.vmem %s6, %s585
        // Predicated region
        $region53: #{tpu_custom_call.1} parent=43 // pred_check
          %p587 = pneg %p190
        $region54: #{tpu_custom_call.1} parent=43 // pred_check_branch
          %589 = sbr.rel (%p587) target = $region56
        $region55: #{tpu_custom_call.1} parent=43 // pred_region
          _
        $region56: #{tpu_custom_call.1} parent=43 // pred_fallthru
          _
      $region44: #{tpu_custom_call.1} parent=5 // pred_fallthru
        _
      %p590 = scmp.le.s32.totalorder 2, %s15
      // Predicated region
      $region57: #{tpu_custom_call.1} parent=5 // pred_check
        %p591 = pneg %p590
      $region58: #{tpu_custom_call.1} parent=5 // pred_check_branch
        %593 = sbr.rel (%p591) target = $region60
      $region59: #{tpu_custom_call.1} parent=5 // pred_region
        %s594 = ssub.s32 %s15, 2
        // Predicated region
        $region61: #{tpu_custom_call.1} parent=59 // pred_check
          %p595 = pneg %p196
        $region62: #{tpu_custom_call.1} parent=59 // pred_check_branch
          %597 = sbr.rel (%p595) target = $region64
        $region63: #{tpu_custom_call.1} parent=59 // pred_region
          %p598 = scmp.lt.s32.totalorder %s26, 1
          %s599 = scalar_select %p598, %s26, 1
          %s600 = smul.addr %s599, 8
          %s601 = scalar_lea.vmem %s6, %s600
        $region64: #{tpu_custom_call.1} parent=59 // pred_fallthru
          _
      $region60: #{tpu_custom_call.1} parent=5 // pred_fallthru
        _
    $region6: #{tpu_custom_call.1} parent=1 // loop_footer
      %s19 = sadd.s32 1, %s15
    $region7: #{tpu_custom_call.1} parent=1 // loop_footer_branch
      %14 = sbr.rel target = $region3
    $region8: #{tpu_custom_call.1} parent=1 // loop_exit
      _
    %602 = vsyncpa [#allocation3], 1
    %s603 = scalar_lea.sflag [#allocation3], 1
    %604 = vsyncpa %s603, 1

</llo_original>
